<compile_context>
chip_gen: v5e
topology: v5e:2x2
jax: 0.10.0
libtpu: 0.0.40
codegen_flags: <defaults>
</compile_context>

<pallas_src>
import functools

import jax
import jax.numpy as jnp
from jax.experimental import pallas as pl
from jax.experimental.pallas import tpu as pltpu


def _ddpg_kernel(state_ref, w1_ref, b1_ref, w2_ref, b2_ref, emb_ref,
                 scores_ref, *, n_items, tile_n):
    # ---- actor MLP + action L2-norm (tiny; recomputed per tile so the item
    # axis stays "parallel" and shardable across TensorCores) ----
    h = jnp.dot(state_ref[...], w1_ref[...], preferred_element_type=jnp.float32)
    h = jnp.maximum(h + b1_ref[...], 0.0)
    a = jnp.dot(h, w2_ref[...], preferred_element_type=jnp.float32)
    a = jnp.tanh(a + b2_ref[...])
    a_inv = jax.lax.rsqrt(
        jnp.maximum(jnp.sum(a * a, axis=1, keepdims=True), 1e-30))
    a = a * a_inv                                           # (B, D)

    # ---- normalize this lane-dense (D, tile_n) embedding tile along D ----
    # (sublane reduction; rsqrt on the EUP, multiply on the VPU)
    e = emb_ref[...]
    e_inv = jax.lax.rsqrt(
        jnp.maximum(jnp.sum(e * e, axis=0, keepdims=True), 1e-30))
    e = e * e_inv

    # ---- standard (B, D) @ (D, tile_n) contraction -> lane-dense output ----
    s = jnp.dot(a, e, preferred_element_type=jnp.float32)   # (B, tile_n)

    # ---- mask padded tail columns (global index >= n_items) to -inf so
    # top_k can consume the full padded score slab directly ----
    col = (pl.program_id(0) * tile_n
           + jax.lax.broadcasted_iota(jnp.int32, s.shape, 1))
    scores_ref[...] = jnp.where(col < n_items, s, -jnp.inf)


def prepare_item_table(item_embeds, tile_n=1024):
    """One-time layout prep (do this OUTSIDE the serving loop):
    transpose the (N, D) item table to lane-dense (D, N) and zero-pad the
    item axis up to a multiple of tile_n.  Padded columns are masked to -inf
    inside the kernel."""
    n_items, d = item_embeds.shape
    n_pad = pl.cdiv(n_items, tile_n) * tile_n
    emb_t = item_embeds.T                                    # (D, N)
    if n_pad != n_items:
        emb_t = jnp.concatenate(
            [emb_t, jnp.zeros((d, n_pad - n_items), item_embeds.dtype)],
            axis=1)
    return emb_t, n_items


def ddpg_forward(state, w1, b1, w2, b2, emb_t, n_items, k=10, tile_n=1024):
    B, S = state.shape
    H = w1.shape[1]
    D = w2.shape[1]
    assert emb_t.shape[0] == D and emb_t.shape[1] % tile_n == 0
    n_pad = emb_t.shape[1]
    # Keep n_tiles >= 2 when possible so v7x's two TensorCores both get work.
    n_tiles = n_pad // tile_n

    kernel = functools.partial(_ddpg_kernel, n_items=n_items, tile_n=tile_n)

    cost = pl.CostEstimate(
        flops=(2 * B * n_pad * D                       # score matmul
               + 3 * n_pad * D                         # embed normalization
               + n_tiles * (2 * B * S * H + 2 * B * H * D)),   # actor per tile
        transcendentals=n_pad + n_tiles * (B * D + B),  # rsqrt + tanh
        bytes_accessed=(D * n_pad + B * n_pad
                        + n_tiles * (B * S + S * H + H + H * D + D)) * 4,
    )

    scores = pl.pallas_call(
        kernel,
        out_shape=jax.ShapeDtypeStruct((B, n_pad), jnp.float32),
        grid=(n_tiles,),
        in_specs=[
            # Constant block index -> state / weights DMA'd once, stay
            # VMEM-resident across all item tiles.
            pl.BlockSpec((B, S), lambda i: (0, 0)),
            pl.BlockSpec((S, H), lambda i: (0, 0)),
            pl.BlockSpec((1, H), lambda i: (0, 0)),
            pl.BlockSpec((H, D), lambda i: (0, 0)),
            pl.BlockSpec((1, D), lambda i: (0, 0)),
            # Streamed, double-buffered lane-dense embedding tiles.
            pl.BlockSpec((D, tile_n), lambda i: (0, i)),
        ],
        out_specs=pl.BlockSpec((B, tile_n), lambda i: (0, i)),
        compiler_params=pltpu.CompilerParams(
            dimension_semantics=("parallel",)),          # 2-TC sharding on v7x
        cost_estimate=cost,
    )(state, w1, b1, w2, b2, emb_t)

    # TODO(synk): top-k index selection has no clean in-kernel Pallas
    # equivalent; done with jax.lax.top_k on the kernel-computed scores
    # (padded tail already masked to -inf, so no slicing needed).
    _, rec_idxs = jax.lax.top_k(scores, k)
    return rec_idxs, scores


def _reference_forward(state, w1, b1, w2, b2, item_embeds, k=10):
    h = jnp.maximum(state @ w1 + b1, 0.0)
    a = jnp.tanh(h @ w2 + b2)
    a = a / jnp.linalg.norm(a, axis=1, keepdims=True)
    e = item_embeds / jnp.linalg.norm(item_embeds, axis=1, keepdims=True)
    scores = a @ e.T
    _, idx = jax.lax.top_k(scores, k)
    return idx, scores


if __name__ == "__main__":
    key = jax.random.PRNGKey(0)
    # batch, state_dim, hidden, embed_dim, n_items (N not a tile multiple on
    # purpose, to exercise the padding + in-kernel masking path).
    B, S, H, D, N = 8, 64, 128, 32, 2000

    ks = jax.random.split(key, 6)
    state = jax.random.normal(ks[0], (B, S), jnp.float32)
    w1 = jax.random.normal(ks[1], (S, H), jnp.float32) * 0.1
    b1 = jax.random.normal(ks[2], (1, H), jnp.float32) * 0.01
    w2 = jax.random.normal(ks[3], (H, D), jnp.float32) * 0.1
    b2 = jax.random.normal(ks[4], (1, D), jnp.float32) * 0.01
    item_embeds = jax.random.normal(ks[5], (N, D), jnp.float32)

    # One-time table prep (layout + padding), then the streaming forward.
    emb_t, n_items = prepare_item_table(item_embeds, tile_n=1024)
    rec_idxs, scores = ddpg_forward(state, w1, b1, w2, b2, emb_t, n_items,
                                    k=10, tile_n=1024)
    rec_idxs = jax.block_until_ready(rec_idxs)

    ref_idxs, ref_scores = _reference_forward(state, w1, b1, w2, b2,
                                              item_embeds, k=10)

    assert rec_idxs.shape == (B, 10)
    assert bool(jnp.all(rec_idxs < N))
    assert jnp.allclose(scores[:, :N], ref_scores, atol=1e-5, rtol=1e-5)
    # Index agreement check that tolerates numerically-tied scores: the
    # reference scores gathered at our top-k indices must equal the reference
    # top-k values.
    gathered = jnp.take_along_axis(ref_scores, rec_idxs, axis=1)
    ref_vals, _ = jax.lax.top_k(ref_scores, 10)
    assert jnp.allclose(gathered, ref_vals, atol=1e-5, rtol=1e-5)

    print("KERNEL_OK")
</pallas_src>

<mosaic_0001>
module attributes {stable_mosaic.version = 11 : i64} {
  func.func @_ddpg_kernel(%arg0: i32, %arg1: memref<8x64xf32, #tpu.memory_space<vmem>>, %arg2: memref<64x128xf32, #tpu.memory_space<vmem>>, %arg3: memref<1x128xf32, #tpu.memory_space<vmem>>, %arg4: memref<128x32xf32, #tpu.memory_space<vmem>>, %arg5: memref<1x32xf32, #tpu.memory_space<vmem>>, %arg6: memref<32x1024xf32, #tpu.memory_space<vmem>>, %arg7: memref<8x1024xf32, #tpu.memory_space<vmem>>) attributes {dimension_semantics = [#tpu.dimension_semantics<parallel>], iteration_bounds = array<i64: 2>, scalar_prefetch = 0 : i64, scratch_operands = 0 : i64, tpu.core_type = #tpu.core_type<tc>, window_params = [{pipeline_mode = #tpu.pipeline_mode<synchronous>, transform_indices = @transform_0, window_bounds = array<i64: 8, 64>}, {pipeline_mode = #tpu.pipeline_mode<synchronous>, transform_indices = @transform_1, window_bounds = array<i64: 64, 128>}, {pipeline_mode = #tpu.pipeline_mode<synchronous>, transform_indices = @transform_2, window_bounds = array<i64: 1, 128>}, {pipeline_mode = #tpu.pipeline_mode<synchronous>, transform_indices = @transform_3, window_bounds = array<i64: 128, 32>}, {pipeline_mode = #tpu.pipeline_mode<synchronous>, transform_indices = @transform_4, window_bounds = array<i64: 1, 32>}, {transform_indices = @transform_5, window_bounds = array<i64: 32, 1024>}, {transform_indices = @transform_6, window_bounds = array<i64: 8, 1024>}]} {
    %c0 = arith.constant 0 : index
    %c0_0 = arith.constant 0 : index
    %0 = vector.load %arg1[%c0, %c0_0] : memref<8x64xf32, #tpu.memory_space<vmem>>, vector<8x64xf32>
    %c0_1 = arith.constant 0 : index
    %c0_2 = arith.constant 0 : index
    %1 = vector.load %arg2[%c0_1, %c0_2] : memref<64x128xf32, #tpu.memory_space<vmem>>, vector<64x128xf32>
    %cst = arith.constant dense<0.000000e+00> : vector<8x128xf32>
    %2 = tpu.matmul %0, %1, %cst {dimension_numbers = #tpu.dot_dimension_numbers<[1], [0], [0], [1], [0, 0, 1, 1], [], []>} : vector<8x64xf32>, vector<64x128xf32>, vector<8x128xf32> -> vector<8x128xf32>
    %c0_3 = arith.constant 0 : index
    %c0_4 = arith.constant 0 : index
    %3 = vector.load %arg3[%c0_3, %c0_4] : memref<1x128xf32, #tpu.memory_space<vmem>>, vector<1x128xf32>
    %4 = vector.broadcast %3 : vector<1x128xf32> to vector<8x128xf32>
    %5 = arith.addf %2, %4 : vector<8x128xf32>
    %cst_5 = arith.constant 0.000000e+00 : f32
    %6 = vector.broadcast %cst_5 : f32 to vector<8x128xf32>
    %7 = arith.maximumf %5, %6 : vector<8x128xf32>
    %c0_6 = arith.constant 0 : index
    %c0_7 = arith.constant 0 : index
    %8 = vector.load %arg4[%c0_6, %c0_7] : memref<128x32xf32, #tpu.memory_space<vmem>>, vector<128x32xf32>
    %cst_8 = arith.constant dense<0.000000e+00> : vector<8x32xf32>
    %9 = tpu.matmul %7, %8, %cst_8 {dimension_numbers = #tpu.dot_dimension_numbers<[1], [0], [0], [1], [0, 0, 1, 1], [], []>} : vector<8x128xf32>, vector<128x32xf32>, vector<8x32xf32> -> vector<8x32xf32>
    %c0_9 = arith.constant 0 : index
    %c0_10 = arith.constant 0 : index
    %10 = vector.load %arg5[%c0_9, %c0_10] : memref<1x32xf32, #tpu.memory_space<vmem>>, vector<1x32xf32>
    %11 = vector.broadcast %10 : vector<1x32xf32> to vector<8x32xf32>
    %12 = arith.addf %9, %11 : vector<8x32xf32>
    %13 = math.tanh %12 : vector<8x32xf32>
    %14 = arith.mulf %13, %13 : vector<8x32xf32>
    %cst_11 = arith.constant dense<0.000000e+00> : vector<8xf32>
    %15 = vector.multi_reduction <add>, %14, %cst_11 [1] : vector<8x32xf32> to vector<8xf32>
    %16 = vector.shape_cast %15 : vector<8xf32> to vector<8x1xf32>
    %cst_12 = arith.constant 1.000000e-30 : f32
    %17 = vector.broadcast %cst_12 : f32 to vector<8x1xf32>
    %18 = arith.maximumf %16, %17 : vector<8x1xf32>
    %19 = math.rsqrt %18 : vector<8x1xf32>
    %20 = vector.broadcast %19 : vector<8x1xf32> to vector<8x32xf32>
    %21 = arith.mulf %13, %20 : vector<8x32xf32>
    %c0_13 = arith.constant 0 : index
    %c0_14 = arith.constant 0 : index
    %22 = vector.load %arg6[%c0_13, %c0_14] : memref<32x1024xf32, #tpu.memory_space<vmem>>, vector<32x1024xf32>
    %23 = arith.mulf %22, %22 : vector<32x1024xf32>
    %cst_15 = arith.constant dense<0.000000e+00> : vector<1024xf32>
    %24 = vector.multi_reduction <add>, %23, %cst_15 [0] : vector<32x1024xf32> to vector<1024xf32>
    %25 = vector.shape_cast %24 : vector<1024xf32> to vector<1x1024xf32>
    %cst_16 = arith.constant 1.000000e-30 : f32
    %26 = vector.broadcast %cst_16 : f32 to vector<1x1024xf32>
    %27 = arith.maximumf %25, %26 : vector<1x1024xf32>
    %28 = math.rsqrt %27 : vector<1x1024xf32>
    %29 = vector.broadcast %28 : vector<1x1024xf32> to vector<32x1024xf32>
    %30 = arith.mulf %22, %29 : vector<32x1024xf32>
    %cst_17 = arith.constant dense<0.000000e+00> : vector<8x1024xf32>
    %31 = tpu.matmul %21, %30, %cst_17 {dimension_numbers = #tpu.dot_dimension_numbers<[1], [0], [0], [1], [0, 0, 1, 1], [], []>} : vector<8x32xf32>, vector<32x1024xf32>, vector<8x1024xf32> -> vector<8x1024xf32>
    %c1024_i32 = arith.constant 1024 : i32
    %32 = arith.muli %arg0, %c1024_i32 : i32
    %33 = tpu.iota {dimensions = array<i32: 1>} : vector<8x1024xi32>
    %34 = vector.broadcast %32 : i32 to vector<8x1024xi32>
    %35 = arith.addi %34, %33 : vector<8x1024xi32>
    %c2000_i32 = arith.constant 2000 : i32
    %36 = vector.broadcast %c2000_i32 : i32 to vector<8x1024xi32>
    %37 = arith.cmpi slt, %35, %36 : vector<8x1024xi32>
    %cst_18 = arith.constant 0xFF800000 : f32
    %38 = vector.broadcast %cst_18 : f32 to vector<8x1024xf32>
    %39 = arith.select %37, %31, %38 : vector<8x1024xi1>, vector<8x1024xf32>
    %c0_19 = arith.constant 0 : index
    %c0_20 = arith.constant 0 : index
    %40 = vector.load %arg7[%c0_19, %c0_20] : memref<8x1024xf32, #tpu.memory_space<vmem>>, vector<8x1024xf32>
    tpu.vector_store %arg7[%c0_19, %c0_20], %39 {strides = array<i32>} : memref<8x1024xf32, #tpu.memory_space<vmem>>, vector<8x1024xf32>,
    return
  }
  func.func @transform_0(%arg0: i32) -> (i32, i32) {
    %c0_i32 = arith.constant 0 : i32
    %c0_i32_0 = arith.constant 0 : i32
    %c0_i32_1 = arith.constant 0 : i32
    return %c0_i32, %c0_i32_0 : i32, i32
  }
  func.func @transform_1(%arg0: i32) -> (i32, i32) {
    %c0_i32 = arith.constant 0 : i32
    %c0_i32_0 = arith.constant 0 : i32
    %c0_i32_1 = arith.constant 0 : i32
    return %c0_i32, %c0_i32_0 : i32, i32
  }
  func.func @transform_2(%arg0: i32) -> (i32, i32) {
    %c0_i32 = arith.constant 0 : i32
    %c0_i32_0 = arith.constant 0 : i32
    %c0_i32_1 = arith.constant 0 : i32
    return %c0_i32, %c0_i32_0 : i32, i32
  }
  func.func @transform_3(%arg0: i32) -> (i32, i32) {
    %c0_i32 = arith.constant 0 : i32
    %c0_i32_0 = arith.constant 0 : i32
    %c0_i32_1 = arith.constant 0 : i32
    return %c0_i32, %c0_i32_0 : i32, i32
  }
  func.func @transform_4(%arg0: i32) -> (i32, i32) {
    %c0_i32 = arith.constant 0 : i32
    %c0_i32_0 = arith.constant 0 : i32
    %c0_i32_1 = arith.constant 0 : i32
    return %c0_i32, %c0_i32_0 : i32, i32
  }
  func.func @transform_5(%arg0: i32) -> (i32, i32) {
    %c0_i32 = arith.constant 0 : i32
    %c0_i32_0 = arith.constant 0 : i32
    return %c0_i32, %arg0 : i32, i32
  }
  func.func @transform_6(%arg0: i32) -> (i32, i32) {
    %c0_i32 = arith.constant 0 : i32
    %c0_i32_0 = arith.constant 0 : i32
    return %c0_i32, %arg0 : i32, i32
  }
}

</mosaic_0001>

<llo_original>
// kernel: tpu_custom_call.1
$region0: #{tpu_custom_call.1}
  #allocation0 [shape = 'u32[]', space=smem, size = 0x4, offset = 0x4, fixed_abs, tag = 'smem constant byte address 0x4 - core index']
  #allocation1 [shape = 'u32[72,128]{1,0:T(1,128)}', space=vmem, size = 0x9000, scoped, tag = 'internal scratch']
  %s0 = inlined_call_operand.vmem [shape: f32[8,64], index: 0, kind: input, shape index: {}]
  %s1 = inlined_call_operand.vmem [shape: f32[64,128], index: 1, kind: input, shape index: {}]
  %s2 = inlined_call_operand.vmem [shape: f32[1,128], index: 2, kind: input, shape index: {}]
  %s3 = inlined_call_operand.vmem [shape: f32[128,32], index: 3, kind: input, shape index: {}]
  %s4 = inlined_call_operand.vmem [shape: f32[1,32], index: 4, kind: input, shape index: {}]
  %s5 = inlined_call_operand.hbm [shape: f32[32,2048], index: 5, kind: input, shape index: {}]
  %s6 = inlined_call_operand.hbm [shape: f32[8,2048], index: 6, kind: output, shape index: {}]
  %s7 = sld [smem:[#allocation0]]
  $region61: #{tpu_custom_call.1} parent=0
    _
  %s9 = ssub.s32 1, %s7
  %s10 = scalar_select 0, %s9, %s7
  $region1: #{tpu_custom_call.1} parent=0
    #allocation2 [shape = 'u8[262144]{0}', space=vmem, size = 0x40000, scoped, tag = 'input window, operand 5']
    #allocation3 [shape = 's32[2]{0}', space=sflag, size = 0x8, scoped, tag = 'scoped memory for tpu_custom_call.1']
    #allocation4 [shape = 's32[2]{0}', space=sflag, size = 0x8, scoped, tag = 'scoped memory for tpu_custom_call.1']
    #allocation5 [shape = 'u8[65536]{0}', space=vmem, size = 0x10000, scoped, tag = 'output window, operand 0']
    %11 = vsyncpa [#allocation3], 0
    %s12 = scalar_lea.sflag [#allocation3], 1
    %13 = vsyncpa %s12, 0
    %14 = vsyncpa [#allocation4], 0
    %s15 = scalar_lea.sflag [#allocation4], 1
    %16 = vsyncpa %s15, 0
    loop: start=0, step=1, limit=4
    $region2: #{tpu_custom_call.1} parent=1 // loop_pre_header
      _
    $region3: #{tpu_custom_call.1} parent=1 // loop_header
      %s18 = sphi 0, %s22
      %p19 = scmp.ge.s32.totalorder %s18, 4
      %s26 = sphi 0, %s26
      %s28 = sphi 0, %s26
      %s29 = sphi 0, %s28
      %s43 = sphi 0, %s29
      %s47 = sphi 0, %s47
      %s49 = sphi 0, %s47
      %s50 = sphi 0, %s49
      %s64 = sphi 0, %s50
      %s68 = sphi 0, %s68
      %s70 = sphi 0, %s68
      %s71 = sphi 0, %s70
      %s85 = sphi 0, %s71
      %s89 = sphi 0, %s89
      %s91 = sphi 0, %s89
      %s92 = sphi 0, %s91
      %s106 = sphi 0, %s92
      %s110 = sphi 0, %s110
      %s112 = sphi 0, %s110
      %s113 = sphi 0, %s112
      %s127 = sphi 0, %s113
      %s133 = sphi 0, %s135
      %s136 = sphi 0, %s133
      %s137 = sphi 0, %s136
      %s153 = sphi 0, %s137
      %s159 = sphi 0, %s161
      %s162 = sphi 0, %s159
      %s163 = sphi 0, %s162
      %s179 = sphi 0, %s163
    $region4: #{tpu_custom_call.1} parent=1 // loop_header_branch
      %21 = sbr.rel (%p19) target = $region8
    $region5: #{tpu_custom_call.1} parent=1 // loop_body
      %s23 = ssub.s32 %s18, 1
      %s24 = ssub.s32 %s18, 2
      %s25 = sadd.s32 %s18, 1
      %s27 = sadd.s32 %s26, 1
      %p30 = scmp.eq.s32.totalorder %s18, 1
      %p31 = scmp.ne.s32.totalorder %s26, %s28
      %p32 = scmp.eq.s32.totalorder %s18, 0
      %p33 = por %p31, %p32
      %p34 = scmp.ne.s32.totalorder %s26, %s28
      %p35 = scmp.eq.s32.totalorder %s23, 1
      %p36 = por %p34, %p35
      %p37 = scmp.ne.s32.totalorder %s28, %s29
      %p38 = scmp.eq.s32.totalorder %s23, 0
      %p39 = por %p37, %p38
      %p40 = scmp.ne.s32.totalorder %s28, %s29
      %p41 = scmp.eq.s32.totalorder %s24, 1
      %p42 = por %p40, %p41
      %p44 = scmp.ne.s32.totalorder %s29, %s43
      %p45 = scmp.eq.s32.totalorder %s24, 0
      %p46 = por %p44, %p45
      %s48 = sadd.s32 %s47, 1
      %p51 = scmp.eq.s32.totalorder %s18, 1
      %p52 = scmp.ne.s32.totalorder %s47, %s49
      %p53 = scmp.eq.s32.totalorder %s18, 0
      %p54 = por %p52, %p53
      %p55 = scmp.ne.s32.totalorder %s47, %s49
      %p56 = scmp.eq.s32.totalorder %s23, 1
      %p57 = por %p55, %p56
      %p58 = scmp.ne.s32.totalorder %s49, %s50
      %p59 = scmp.eq.s32.totalorder %s23, 0
      %p60 = por %p58, %p59
      %p61 = scmp.ne.s32.totalorder %s49, %s50
      %p62 = scmp.eq.s32.totalorder %s24, 1
      %p63 = por %p61, %p62
      %p65 = scmp.ne.s32.totalorder %s50, %s64
      %p66 = scmp.eq.s32.totalorder %s24, 0
      %p67 = por %p65, %p66
      %s69 = sadd.s32 %s68, 1
      %p72 = scmp.eq.s32.totalorder %s18, 1
      %p73 = scmp.ne.s32.totalorder %s68, %s70
      %p74 = scmp.eq.s32.totalorder %s18, 0
      %p75 = por %p73, %p74
      %p76 = scmp.ne.s32.totalorder %s68, %s70
      %p77 = scmp.eq.s32.totalorder %s23, 1
      %p78 = por %p76, %p77
      %p79 = scmp.ne.s32.totalorder %s70, %s71
      %p80 = scmp.eq.s32.totalorder %s23, 0
      %p81 = por %p79, %p80
      %p82 = scmp.ne.s32.totalorder %s70, %s71
      %p83 = scmp.eq.s32.totalorder %s24, 1
      %p84 = por %p82, %p83
      %p86 = scmp.ne.s32.totalorder %s71, %s85
      %p87 = scmp.eq.s32.totalorder %s24, 0
      %p88 = por %p86, %p87
      %s90 = sadd.s32 %s89, 1
      %p93 = scmp.eq.s32.totalorder %s18, 1
      %p94 = scmp.ne.s32.totalorder %s89, %s91
      %p95 = scmp.eq.s32.totalorder %s18, 0
      %p96 = por %p94, %p95
      %p97 = scmp.ne.s32.totalorder %s89, %s91
      %p98 = scmp.eq.s32.totalorder %s23, 1
      %p99 = por %p97, %p98
      %p100 = scmp.ne.s32.totalorder %s91, %s92
      %p101 = scmp.eq.s32.totalorder %s23, 0
      %p102 = por %p100, %p101
      %p103 = scmp.ne.s32.totalorder %s91, %s92
      %p104 = scmp.eq.s32.totalorder %s24, 1
      %p105 = por %p103, %p104
      %p107 = scmp.ne.s32.totalorder %s92, %s106
      %p108 = scmp.eq.s32.totalorder %s24, 0
      %p109 = por %p107, %p108
      %s111 = sadd.s32 %s110, 1
      %p114 = scmp.eq.s32.totalorder %s18, 1
      %p115 = scmp.ne.s32.totalorder %s110, %s112
      %p116 = scmp.eq.s32.totalorder %s18, 0
      %p117 = por %p115, %p116
      %p118 = scmp.ne.s32.totalorder %s110, %s112
      %p119 = scmp.eq.s32.totalorder %s23, 1
      %p120 = por %p118, %p119
      %p121 = scmp.ne.s32.totalorder %s112, %s113
      %p122 = scmp.eq.s32.totalorder %s23, 0
      %p123 = por %p121, %p122
      %p124 = scmp.ne.s32.totalorder %s112, %s113
      %p125 = scmp.eq.s32.totalorder %s24, 1
      %p126 = por %p124, %p125
      %p128 = scmp.ne.s32.totalorder %s113, %s127
      %p129 = scmp.eq.s32.totalorder %s24, 0
      %p130 = por %p128, %p129
      %s131 = ssub.s32 %s18, %s25
      %p132 = scmp.eq.s32.totalorder %s131, 0
      %s134 = sadd.s32 %s133, 1
      %s135 = scalar_select %p132, %s133, %s134
      %p138 = pneg %p132
      %p139 = scmp.eq.s32.totalorder %s18, 1
      %p140 = por %p138, %p139
      %p141 = scmp.ne.s32.totalorder %s133, %s136
      %p142 = scmp.eq.s32.totalorder %s18, 0
      %p143 = por %p141, %p142
      %p144 = scmp.ne.s32.totalorder %s133, %s136
      %p145 = scmp.eq.s32.totalorder %s23, 1
      %p146 = por %p144, %p145
      %p147 = scmp.ne.s32.totalorder %s136, %s137
      %p148 = scmp.eq.s32.totalorder %s23, 0
      %p149 = por %p147, %p148
      %p150 = scmp.ne.s32.totalorder %s136, %s137
      %p151 = scmp.eq.s32.totalorder %s24, 1
      %p152 = por %p150, %p151
      %p154 = scmp.ne.s32.totalorder %s137, %s153
      %p155 = scmp.eq.s32.totalorder %s24, 0
      %p156 = por %p154, %p155
      %s157 = ssub.s32 %s18, %s25
      %p158 = scmp.eq.s32.totalorder %s157, 0
      %s160 = sadd.s32 %s159, 1
      %s161 = scalar_select %p158, %s159, %s160
      %p164 = pneg %p158
      %p165 = scmp.eq.s32.totalorder %s18, 1
      %p166 = por %p164, %p165
      %p167 = scmp.ne.s32.totalorder %s159, %s162
      %p168 = scmp.eq.s32.totalorder %s18, 0
      %p169 = por %p167, %p168
      %p170 = scmp.ne.s32.totalorder %s159, %s162
      %p171 = scmp.eq.s32.totalorder %s23, 1
      %p172 = por %p170, %p171
      %p173 = scmp.ne.s32.totalorder %s162, %s163
      %p174 = scmp.eq.s32.totalorder %s23, 0
      %p175 = por %p173, %p174
      %p176 = scmp.ne.s32.totalorder %s162, %s163
      %p177 = scmp.eq.s32.totalorder %s24, 1
      %p178 = por %p176, %p177
      %p180 = scmp.ne.s32.totalorder %s163, %s179
      %p181 = scmp.eq.s32.totalorder %s24, 0
      %p182 = por %p180, %p181
      %p183 = scmp.le.s32.totalorder 1, %s18
      %p184 = scmp.lt.s32.totalorder %s18, 3
      %p185 = pnand %p183, %p184
      %p186 = pneg %p185
      // Predicated region
      $region9: #{tpu_custom_call.1} parent=5 // pred_check
        _
      $region10: #{tpu_custom_call.1} parent=5 // pred_check_branch
        %188 = sbr.rel (%p185) target = $region12
      $region11: #{tpu_custom_call.1} parent=5 // pred_region
        %s189 = ssub.s32 %s18, 1
        // Predicated region
        $region13: #{tpu_custom_call.1} parent=11 // pred_check
          %p190 = pneg %p39
        $region14: #{tpu_custom_call.1} parent=11 // pred_check_branch
          %192 = sbr.rel (%p190) target = $region16
        $region15: #{tpu_custom_call.1} parent=11 // pred_region
          _
        $region16: #{tpu_custom_call.1} parent=11 // pred_fallthru
          _
        // Predicated region
        $region17: #{tpu_custom_call.1} parent=11 // pred_check
          %p193 = pneg %p60
        $region18: #{tpu_custom_call.1} parent=11 // pred_check_branch
          %195 = sbr.rel (%p193) target = $region20
        $region19: #{tpu_custom_call.1} parent=11 // pred_region
          _
        $region20: #{tpu_custom_call.1} parent=11 // pred_fallthru
          _
        // Predicated region
        $region21: #{tpu_custom_call.1} parent=11 // pred_check
          %p196 = pneg %p81
        $region22: #{tpu_custom_call.1} parent=11 // pred_check_branch
          %198 = sbr.rel (%p196) target = $region24
        $region23: #{tpu_custom_call.1} parent=11 // pred_region
          _
        $region24: #{tpu_custom_call.1} parent=11 // pred_fallthru
          _
        // Predicated region
        $region25: #{tpu_custom_call.1} parent=11 // pred_check
          %p199 = pneg %p102
        $region26: #{tpu_custom_call.1} parent=11 // pred_check_branch
          %201 = sbr.rel (%p199) target = $region28
        $region27: #{tpu_custom_call.1} parent=11 // pred_region
          _
        $region28: #{tpu_custom_call.1} parent=11 // pred_fallthru
          _
        // Predicated region
        $region29: #{tpu_custom_call.1} parent=11 // pred_check
          %p202 = pneg %p123
        $region30: #{tpu_custom_call.1} parent=11 // pred_check_branch
          %204 = sbr.rel (%p202) target = $region32
        $region31: #{tpu_custom_call.1} parent=11 // pred_region
          _
        $region32: #{tpu_custom_call.1} parent=11 // pred_fallthru
          _
      $region12: #{tpu_custom_call.1} parent=5 // pred_fallthru
        _
      %p205 = scmp.lt.s32.totalorder %s18, 2
      // Predicated region
      $region33: #{tpu_custom_call.1} parent=5 // pred_check
        %p206 = pneg %p205
      $region34: #{tpu_custom_call.1} parent=5 // pred_check_branch
        %208 = sbr.rel (%p206) target = $region36
      $region35: #{tpu_custom_call.1} parent=5 // pred_region
        // Predicated region
        $region37: #{tpu_custom_call.1} parent=35 // pred_check
          %p209 = pneg %p143
        $region38: #{tpu_custom_call.1} parent=35 // pred_check_branch
          %211 = sbr.rel (%p209) target = $region40
        $region39: #{tpu_custom_call.1} parent=35 // pred_region
          %s212 = sand.u32 %s133, 1
          %s213 = scalar_lea.sflag [#allocation3], %s212
          %s214 = sand.u32 %s133, 1
          %s215 = smul.addr %s214, 256
          %s216 = scalar_lea.vmem [#allocation2], %s215
          %s217 = smul.u32 8, %s18
          %219 = vsyncadd %s213, 0
          %s220 = smul.addr %s217, 8
          %s221 = scalar_lea.hbm %s5, %s220
          %s222 = sshll.u32 %s221, 4
          %s223 = int_to_ptr.hbm [resolvable:$true] %s222
          %s224 = sshll.u32 %s216, 4
          %s225 = int_to_ptr.vmem [resolvable:$true] %s224
          %230 = dma.hbm_to_vmem [thread:$0]  %s223, 4096, %s225, %s213, 2048, 1024, 64
        $region40: #{tpu_custom_call.1} parent=35 // pred_fallthru
          _
      $region36: #{tpu_custom_call.1} parent=5 // pred_fallthru
        _
      %p231 = scmp.le.s32.totalorder 1, %s18
      %p232 = scmp.lt.s32.totalorder %s18, 3
      %p233 = pnand %p231, %p232
      %p234 = pneg %p233
      // Predicated region
      $region41: #{tpu_custom_call.1} parent=5 // pred_check
        _
      $region42: #{tpu_custom_call.1} parent=5 // pred_check_branch
        %236 = sbr.rel (%p233) target = $region44
      $region43: #{tpu_custom_call.1} parent=5 // pred_region
        %s237 = ssub.s32 %s18, 1
        %s238 = sand.u32 %s136, 1
        %s239 = scalar_lea.sflag [#allocation3], %s238
        %s240 = sand.u32 %s136, 1
        %s241 = smul.addr %s240, 256
        %s242 = scalar_lea.vmem [#allocation2], %s241
        // Predicated region
        $region45: #{tpu_custom_call.1} parent=43 // pred_check
          %p243 = pneg %p149
        $region46: #{tpu_custom_call.1} parent=43 // pred_check_branch
          %245 = sbr.rel (%p243) target = $region48
        $region47: #{tpu_custom_call.1} parent=43 // pred_region
          %247 = dma.done %s239, 4096
        $region48: #{tpu_custom_call.1} parent=43 // pred_fallthru
          _
        %p248 = pneg %p39
        %p249 = pneg %p36
        %p250 = pneg %p60
        %p251 = pneg %p57
        %p252 = pneg %p81
        %p253 = pneg %p78
        %p254 = pneg %p102
        %p255 = pneg %p99
        %p256 = pneg %p123
        %p257 = pneg %p120
        %s258 = sand.u32 %s136, 1
        %s259 = scalar_lea.sflag [#allocation3], %s258
        %s260 = sand.u32 %s136, 1
        %s261 = smul.addr %s260, 256
        %s262 = scalar_lea.vmem [#allocation2], %s261
        %p263 = pneg %p149
        %p264 = pneg %p146
        %p265 = pneg %p175
        %p266 = pneg %p172
        %s267 = sand.u32 %s162, 1
        %s268 = scalar_lea.sflag [#allocation4], %s267
        %s269 = sand.u32 %s162, 1
        %s270 = smul.addr %s269, 64
        %s271 = scalar_lea.vmem [#allocation5], %s270
        %s272 = smul.u32 8, %s23
        %s273 = smul.u32 8, %s23
        %v274 = vld [vmem:[%s0] sm:$0xff]
        %v275 = vld [vmem:[%s1] sm:$0xff]
        %v276 = vld [vmem:[%s1 + $0x8] sm:$0xff]
        %v277 = vld [vmem:[%s1 + $0x10] sm:$0xff]
        %v278 = vld [vmem:[%s1 + $0x18] sm:$0xff]
        %v279 = vld [vmem:[%s1 + $0x20] sm:$0xff]
        %v280 = vld [vmem:[%s1 + $0x28] sm:$0xff]
        %v281 = vld [vmem:[%s1 + $0x30] sm:$0xff]
        %v282 = vld [vmem:[%s1 + $0x38] sm:$0xff]
        %v283 = vld [vmem:[%s2] sm:$0x1]
        %v285 = vperm.slane %v283, 0
        %vm287 = vcmask 523264
        %v289 = vsel %vm287, %v274, 0
        %291 = vmatpush.msra.mxu0 0.0
        %292 = vmatpush.msra.mxu0 0.0
        %293 = vmatpush.msra.mxu0 0.0
        %294 = vmatpush.msra.mxu0 0.0
        %295 = vmatpush.msra.mxu0 0.0
        %296 = vmatpush.msra.mxu0 0.0
        %297 = vmatpush.msra.mxu0 0.0
        %298 = vmatpush.msra.mxu0 0.0
        %299 = vmatpush.msra.mxu0 %v282
        %300 = vmatpush.msra.mxu0 %v281
        %301 = vmatpush.msra.mxu0 %v280
        %302 = vmatpush.msra.mxu0 %v279
        %303 = vmatpush.msra.mxu0 %v278
        %304 = vmatpush.msra.mxu0 %v277
        %305 = vmatpush.msra.mxu0 %v276
        %306 = vmatpush.msra.mxu0 %v275
        %307 = vmatmul.f32.gmra.mxu0 %v289
        %v308 = vpop.f32.mrf.mxu0
        %v309 = vadd.f32 %v285, %v308
        %310 = vdwg.mxu0
        %v311 = vmax.f32 %v309, 0.0
        %v312 = vld [vmem:[%s3] sm:$0xff]
        %v313 = vld [vmem:[%s3 + $0x8] sm:$0xff]
        %v314 = vld [vmem:[%s3 + $0x10] sm:$0xff]
        %v315 = vld [vmem:[%s3 + $0x18] sm:$0xff]
        %v316 = vld [vmem:[%s3 + $0x20] sm:$0xff]
        %v317 = vld [vmem:[%s3 + $0x28] sm:$0xff]
        %v318 = vld [vmem:[%s3 + $0x30] sm:$0xff]
        %v319 = vld [vmem:[%s3 + $0x38] sm:$0xff]
        %v320 = vld [vmem:[%s3 + $0x40] sm:$0xff]
        %v321 = vld [vmem:[%s3 + $0x48] sm:$0xff]
        %v322 = vld [vmem:[%s3 + $0x50] sm:$0xff]
        %v323 = vld [vmem:[%s3 + $0x58] sm:$0xff]
        %v324 = vld [vmem:[%s3 + $0x60] sm:$0xff]
        %v325 = vld [vmem:[%s3 + $0x68] sm:$0xff]
        %v326 = vld [vmem:[%s3 + $0x70] sm:$0xff]
        %v327 = vld [vmem:[%s3 + $0x78] sm:$0xff]
        %v328 = vld [vmem:[%s4] sm:$0x1]
        %v330 = vperm.slane %v328, 0
        %332 = vmatpush.msra.mxu0 %v327
        %333 = vmatpush.msra.mxu0 %v326
        %334 = vmatpush.msra.mxu0 %v325
        %335 = vmatpush.msra.mxu0 %v324
        %336 = vmatpush.msra.mxu0 %v323
        %337 = vmatpush.msra.mxu0 %v322
        %338 = vmatpush.msra.mxu0 %v321
        %339 = vmatpush.msra.mxu0 %v320
        %340 = vmatpush.msra.mxu0 %v319
        %341 = vmatpush.msra.mxu0 %v318
        %342 = vmatpush.msra.mxu0 %v317
        %343 = vmatpush.msra.mxu0 %v316
        %344 = vmatpush.msra.mxu0 %v315
        %345 = vmatpush.msra.mxu0 %v314
        %346 = vmatpush.msra.mxu0 %v313
        %347 = vmatpush.msra.mxu0 %v312
        %348 = vmatmul.f32.gmra.mxu0 %v311
        %v349 = vpop.f32.mrf.mxu0
        %v350 = vadd.f32 %v330, %v349
        %351 = vdwg.mxu0
        %v352 = vtanh.pop %v350
        %v353 = vmul.f32 %v352, %v352
        %vm354 = vcmask 261120
        %v355 = vsel %vm354, %v353, 0.0
        %356 = vadd.xlane.f32.xlu0 %v355
        %v357 = vpop.xlane.xlu0 %356
        %v358 = vmax.f32 %v357, 1e-30
        %v359 = vrsqrt.pop %v358
        %v360 = vmul.f32 %v359, %v358
        %v361 = vmul.f32 %v360, %v359
        %v362 = vmul.f32 0.5, %v361
        %v363 = vsub.f32 1.5, %v362
        %v364 = vmul.f32 %v359, %v363
        %vm365 = vweird.f32 %v358
        %vm366 = vweird.f32 %v359
        %vm367 = vmor %vm365, %vm366
        %v368 = vsel %vm367, %v359, %v364
        %v369 = vmul.f32 %v352, %v368
        %v370 = vld [vmem:[%s242] sm:$0xff]
        %v371 = vld [vmem:[%s242 + $0x8] sm:$0xff]
        %v372 = vld [vmem:[%s242 + $0x10] sm:$0xff]
        %v373 = vld [vmem:[%s242 + $0x18] sm:$0xff]
        %v374 = vld [vmem:[%s242 + $0x20] sm:$0xff]
        %v375 = vld [vmem:[%s242 + $0x28] sm:$0xff]
        %v376 = vld [vmem:[%s242 + $0x30] sm:$0xff]
        %v377 = vld [vmem:[%s242 + $0x38] sm:$0xff]
        %v378 = vld [vmem:[%s242 + $0x40] sm:$0xff]
        %v379 = vld [vmem:[%s242 + $0x48] sm:$0xff]
        %v380 = vld [vmem:[%s242 + $0x50] sm:$0xff]
        %v381 = vld [vmem:[%s242 + $0x58] sm:$0xff]
        %v382 = vld [vmem:[%s242 + $0x60] sm:$0xff]
        %v383 = vld [vmem:[%s242 + $0x68] sm:$0xff]
        %v384 = vld [vmem:[%s242 + $0x70] sm:$0xff]
        %v385 = vld [vmem:[%s242 + $0x78] sm:$0xff]
        %v386 = vld [vmem:[%s242 + $0x80] sm:$0xff]
        %v387 = vld [vmem:[%s242 + $0x88] sm:$0xff]
        %v388 = vld [vmem:[%s242 + $0x90] sm:$0xff]
        %v389 = vld [vmem:[%s242 + $0x98] sm:$0xff]
        %v390 = vld [vmem:[%s242 + $0xa0] sm:$0xff]
        %v391 = vld [vmem:[%s242 + $0xa8] sm:$0xff]
        %v392 = vld [vmem:[%s242 + $0xb0] sm:$0xff]
        %v393 = vld [vmem:[%s242 + $0xb8] sm:$0xff]
        %v394 = vld [vmem:[%s242 + $0xc0] sm:$0xff]
        %v395 = vld [vmem:[%s242 + $0xc8] sm:$0xff]
        %v396 = vld [vmem:[%s242 + $0xd0] sm:$0xff]
        %v397 = vld [vmem:[%s242 + $0xd8] sm:$0xff]
        %v398 = vld [vmem:[%s242 + $0xe0] sm:$0xff]
        %v399 = vld [vmem:[%s242 + $0xe8] sm:$0xff]
        %v400 = vld [vmem:[%s242 + $0xf0] sm:$0xff]
        %v401 = vld [vmem:[%s242 + $0xf8] sm:$0xff]
        %v402 = vmul.f32 %v370, %v370
        %v403 = vmul.f32 %v371, %v371
        %v404 = vmul.f32 %v372, %v372
        %v405 = vmul.f32 %v373, %v373
        %v406 = vmul.f32 %v374, %v374
        %v407 = vmul.f32 %v375, %v375
        %v408 = vmul.f32 %v376, %v376
        %v409 = vmul.f32 %v377, %v377
        %v410 = vmul.f32 %v378, %v378
        %v411 = vmul.f32 %v379, %v379
        %v412 = vmul.f32 %v380, %v380
        %v413 = vmul.f32 %v381, %v381
        %v414 = vmul.f32 %v382, %v382
        %v415 = vmul.f32 %v383, %v383
        %v416 = vmul.f32 %v384, %v384
        %v417 = vmul.f32 %v385, %v385
        %v418 = vmul.f32 %v386, %v386
        %v419 = vmul.f32 %v387, %v387
        %v420 = vmul.f32 %v388, %v388
        %v421 = vmul.f32 %v389, %v389
        %v422 = vmul.f32 %v390, %v390
        %v423 = vmul.f32 %v391, %v391
        %v424 = vmul.f32 %v392, %v392
        %v425 = vmul.f32 %v393, %v393
        %v426 = vmul.f32 %v394, %v394
        %v427 = vmul.f32 %v395, %v395
        %v428 = vmul.f32 %v396, %v396
        %v429 = vmul.f32 %v397, %v397
        %v430 = vmul.f32 %v398, %v398
        %v431 = vmul.f32 %v399, %v399
        %v432 = vmul.f32 %v400, %v400
        %v433 = vmul.f32 %v401, %v401
        %v434 = vadd.f32 %v402, %v410
        %v435 = vadd.f32 %v434, %v418
        %v436 = vadd.f32 %v435, %v426
        %v437 = vrot.slane %v436, 4
        %v438 = vadd.f32 %v436, %v437
        %v439 = vrot.slane %v438, 2
        %v440 = vadd.f32 %v438, %v439
        %v441 = vrot.slane %v440, 1
        %v442 = vadd.f32 %v440, %v441
        %v443 = vadd.f32 %v403, %v411
        %v444 = vadd.f32 %v443, %v419
        %v445 = vadd.f32 %v444, %v427
        %v446 = vrot.slane %v445, 4
        %v447 = vadd.f32 %v445, %v446
        %v448 = vrot.slane %v447, 2
        %v449 = vadd.f32 %v447, %v448
        %v450 = vrot.slane %v449, 1
        %v451 = vadd.f32 %v449, %v450
        %v452 = vadd.f32 %v404, %v412
        %v453 = vadd.f32 %v452, %v420
        %v454 = vadd.f32 %v453, %v428
        %v455 = vrot.slane %v454, 4
        %v456 = vadd.f32 %v454, %v455
        %v457 = vrot.slane %v456, 2
        %v458 = vadd.f32 %v456, %v457
        %v459 = vrot.slane %v458, 1
        %v460 = vadd.f32 %v458, %v459
        %v461 = vadd.f32 %v405, %v413
        %v462 = vadd.f32 %v461, %v421
        %v463 = vadd.f32 %v462, %v429
        %v464 = vrot.slane %v463, 4
        %v465 = vadd.f32 %v463, %v464
        %v466 = vrot.slane %v465, 2
        %v467 = vadd.f32 %v465, %v466
        %v468 = vrot.slane %v467, 1
        %v469 = vadd.f32 %v467, %v468
        %v470 = vadd.f32 %v406, %v414
        %v471 = vadd.f32 %v470, %v422
        %v472 = vadd.f32 %v471, %v430
        %v473 = vrot.slane %v472, 4
        %v474 = vadd.f32 %v472, %v473
        %v475 = vrot.slane %v474, 2
        %v476 = vadd.f32 %v474, %v475
        %v477 = vrot.slane %v476, 1
        %v478 = vadd.f32 %v476, %v477
        %v479 = vadd.f32 %v407, %v415
        %v480 = vadd.f32 %v479, %v423
        %v481 = vadd.f32 %v480, %v431
        %v482 = vrot.slane %v481, 4
        %v483 = vadd.f32 %v481, %v482
        %v484 = vrot.slane %v483, 2
        %v485 = vadd.f32 %v483, %v484
        %v486 = vrot.slane %v485, 1
        %v487 = vadd.f32 %v485, %v486
        %v488 = vadd.f32 %v408, %v416
        %v489 = vadd.f32 %v488, %v424
        %v490 = vadd.f32 %v489, %v432
        %v491 = vrot.slane %v490, 4
        %v492 = vadd.f32 %v490, %v491
        %v493 = vrot.slane %v492, 2
        %v494 = vadd.f32 %v492, %v493
        %v495 = vrot.slane %v494, 1
        %v496 = vadd.f32 %v494, %v495
        %v497 = vadd.f32 %v409, %v417
        %v498 = vadd.f32 %v497, %v425
        %v499 = vadd.f32 %v498, %v433
        %v500 = vrot.slane %v499, 4
        %v501 = vadd.f32 %v499, %v500
        %v502 = vrot.slane %v501, 2
        %v503 = vadd.f32 %v501, %v502
        %v504 = vrot.slane %v503, 1
        %v505 = vadd.f32 %v503, %v504
        %v506 = vmax.f32 %v442, 1e-30
        %v507 = vmax.f32 %v451, 1e-30
        %v508 = vmax.f32 %v460, 1e-30
        %v509 = vmax.f32 %v469, 1e-30
        %v510 = vmax.f32 %v478, 1e-30
        %v511 = vmax.f32 %v487, 1e-30
        %v512 = vmax.f32 %v496, 1e-30
        %v513 = vmax.f32 %v505, 1e-30
        %v514 = vrsqrt.pop %v506
        %v515 = vmul.f32 %v514, %v506
        %v516 = vmul.f32 %v515, %v514
        %v517 = vmul.f32 0.5, %v516
        %v518 = vsub.f32 1.5, %v517
        %v519 = vmul.f32 %v514, %v518
        %vm520 = vweird.f32 %v506
        %vm521 = vweird.f32 %v514
        %vm522 = vmor %vm520, %vm521
        %v523 = vsel %vm522, %v514, %v519
        %v524 = vrsqrt.pop %v507
        %v525 = vmul.f32 %v524, %v507
        %v526 = vmul.f32 %v525, %v524
        %v527 = vmul.f32 0.5, %v526
        %v528 = vsub.f32 1.5, %v527
        %v529 = vmul.f32 %v524, %v528
        %vm530 = vweird.f32 %v507
        %vm531 = vweird.f32 %v524
        %vm532 = vmor %vm530, %vm531
        %v533 = vsel %vm532, %v524, %v529
        %v534 = vrsqrt.pop %v508
        %v535 = vmul.f32 %v534, %v508
        %v536 = vmul.f32 %v535, %v534
        %v537 = vmul.f32 0.5, %v536
        %v538 = vsub.f32 1.5, %v537
        %v539 = vmul.f32 %v534, %v538
        %vm540 = vweird.f32 %v508
        %vm541 = vweird.f32 %v534
        %vm542 = vmor %vm540, %vm541
        %v543 = vsel %vm542, %v534, %v539
        %v544 = vrsqrt.pop %v509
        %v545 = vmul.f32 %v544, %v509
        %v546 = vmul.f32 %v545, %v544
        %v547 = vmul.f32 0.5, %v546
        %v548 = vsub.f32 1.5, %v547
        %v549 = vmul.f32 %v544, %v548
        %vm550 = vweird.f32 %v509
        %vm551 = vweird.f32 %v544
        %vm552 = vmor %vm550, %vm551
        %v553 = vsel %vm552, %v544, %v549
        %v554 = vrsqrt.pop %v510
        %v555 = vmul.f32 %v554, %v510
        %v556 = vmul.f32 %v555, %v554
        %v557 = vmul.f32 0.5, %v556
        %v558 = vsub.f32 1.5, %v557
        %v559 = vmul.f32 %v554, %v558
        %vm560 = vweird.f32 %v510
        %vm561 = vweird.f32 %v554
        %vm562 = vmor %vm560, %vm561
        %v563 = vsel %vm562, %v554, %v559
        %v564 = vrsqrt.pop %v511
        %v565 = vmul.f32 %v564, %v511
        %v566 = vmul.f32 %v565, %v564
        %v567 = vmul.f32 0.5, %v566
        %v568 = vsub.f32 1.5, %v567
        %v569 = vmul.f32 %v564, %v568
        %vm570 = vweird.f32 %v511
        %vm571 = vweird.f32 %v564
        %vm572 = vmor %vm570, %vm571
        %v573 = vsel %vm572, %v564, %v569
        %v574 = vrsqrt.pop %v512
        %v575 = vmul.f32 %v574, %v512
        %v576 = vmul.f32 %v575, %v574
        %v577 = vmul.f32 0.5, %v576
        %v578 = vsub.f32 1.5, %v577
        %v579 = vmul.f32 %v574, %v578
        %vm580 = vweird.f32 %v512
        %vm581 = vweird.f32 %v574
        %vm582 = vmor %vm580, %vm581
        %v583 = vsel %vm582, %v574, %v579
        %v584 = vrsqrt.pop %v513
        %v585 = vmul.f32 %v584, %v513
        %v586 = vmul.f32 %v585, %v584
        %v587 = vmul.f32 0.5, %v586
        %v588 = vsub.f32 1.5, %v587
        %v589 = vmul.f32 %v584, %v588
        %vm590 = vweird.f32 %v513
        %vm591 = vweird.f32 %v584
        %vm592 = vmor %vm590, %vm591
        %v593 = vsel %vm592, %v584, %v589
        %v594 = vmul.f32 %v370, %v523
        %v595 = vmul.f32 %v371, %v533
        %v596 = vmul.f32 %v372, %v543
        %v597 = vmul.f32 %v373, %v553
        %v598 = vmul.f32 %v374, %v563
        %v599 = vmul.f32 %v375, %v573
        %v600 = vmul.f32 %v376, %v583
        %v601 = vmul.f32 %v377, %v593
        %v602 = vmul.f32 %v378, %v523
        %v603 = vmul.f32 %v379, %v533
        %v604 = vmul.f32 %v380, %v543
        %v605 = vmul.f32 %v381, %v553
        %v606 = vmul.f32 %v382, %v563
        %v607 = vmul.f32 %v383, %v573
        %v608 = vmul.f32 %v384, %v583
        %v609 = vmul.f32 %v385, %v593
        %v610 = vmul.f32 %v386, %v523
        %v611 = vmul.f32 %v387, %v533
        %v612 = vmul.f32 %v388, %v543
        %v613 = vmul.f32 %v389, %v553
        %v614 = vmul.f32 %v390, %v563
        %v615 = vmul.f32 %v391, %v573
        %v616 = vmul.f32 %v392, %v583
        %v617 = vmul.f32 %v393, %v593
        %v618 = vmul.f32 %v394, %v523
        %v619 = vmul.f32 %v395, %v533
        %v620 = vmul.f32 %v396, %v543
        %v621 = vmul.f32 %v397, %v553
        %v622 = vmul.f32 %v398, %v563
        %v623 = vmul.f32 %v399, %v573
        %v624 = vmul.f32 %v400, %v583
        %v625 = vmul.f32 %v401, %v593
        %v627 = vsel %vm354, %v369, 0
        %629 = vmatpush.msra.mxu0 0.0
        %630 = vmatpush.msra.mxu0 0.0
        %631 = vmatpush.msra.mxu0 0.0
        %632 = vmatpush.msra.mxu0 0.0
        %633 = vmatpush.msra.mxu0 0.0
        %634 = vmatpush.msra.mxu0 0.0
        %635 = vmatpush.msra.mxu0 0.0
        %636 = vmatpush.msra.mxu0 0.0
        %637 = vmatpush.msra.mxu0 0.0
        %638 = vmatpush.msra.mxu0 0.0
        %639 = vmatpush.msra.mxu0 0.0
        %640 = vmatpush.msra.mxu0 0.0
        %641 = vmatpush.msra.mxu0 %v618
        %642 = vmatpush.msra.mxu0 %v610
        %643 = vmatpush.msra.mxu0 %v602
        %644 = vmatpush.msra.mxu0 %v594
        %645 = vmatmul.f32.gmra.mxu0 %v627
        %v646 = vpop.f32.mrf.mxu0
        %v647 = vadd.f32 0.0, %v646
        %648 = vdwg.mxu0
        %649 = vmatpush.msra.mxu0 0.0
        %650 = vmatpush.msra.mxu0 0.0
        %651 = vmatpush.msra.mxu0 0.0
        %652 = vmatpush.msra.mxu0 0.0
        %653 = vmatpush.msra.mxu0 0.0
        %654 = vmatpush.msra.mxu0 0.0
        %655 = vmatpush.msra.mxu0 0.0
        %656 = vmatpush.msra.mxu0 0.0
        %657 = vmatpush.msra.mxu0 0.0
        %658 = vmatpush.msra.mxu0 0.0
        %659 = vmatpush.msra.mxu0 0.0
        %660 = vmatpush.msra.mxu0 0.0
        %661 = vmatpush.msra.mxu0 %v619
        %662 = vmatpush.msra.mxu0 %v611
        %663 = vmatpush.msra.mxu0 %v603
        %664 = vmatpush.msra.mxu0 %v595
        %665 = vmatmul.f32.gmra.mxu0 %v627
        %v666 = vpop.f32.mrf.mxu0
        %v667 = vadd.f32 0.0, %v666
        %668 = vdwg.mxu0
        %669 = vmatpush.msra.mxu0 0.0
        %670 = vmatpush.msra.mxu0 0.0
        %671 = vmatpush.msra.mxu0 0.0
        %672 = vmatpush.msra.mxu0 0.0
        %673 = vmatpush.msra.mxu0 0.0
        %674 = vmatpush.msra.mxu0 0.0
        %675 = vmatpush.msra.mxu0 0.0
        %676 = vmatpush.msra.mxu0 0.0
        %677 = vmatpush.msra.mxu0 0.0
        %678 = vmatpush.msra.mxu0 0.0
        %679 = vmatpush.msra.mxu0 0.0
        %680 = vmatpush.msra.mxu0 0.0
        %681 = vmatpush.msra.mxu0 %v620
        %682 = vmatpush.msra.mxu0 %v612
        %683 = vmatpush.msra.mxu0 %v604
        %684 = vmatpush.msra.mxu0 %v596
        %685 = vmatmul.f32.gmra.mxu0 %v627
        %v686 = vpop.f32.mrf.mxu0
        %v687 = vadd.f32 0.0, %v686
        %688 = vdwg.mxu0
        %689 = vmatpush.msra.mxu0 0.0
        %690 = vmatpush.msra.mxu0 0.0
        %691 = vmatpush.msra.mxu0 0.0
        %692 = vmatpush.msra.mxu0 0.0
        %693 = vmatpush.msra.mxu0 0.0
        %694 = vmatpush.msra.mxu0 0.0
        %695 = vmatpush.msra.mxu0 0.0
        %696 = vmatpush.msra.mxu0 0.0
        %697 = vmatpush.msra.mxu0 0.0
        %698 = vmatpush.msra.mxu0 0.0
        %699 = vmatpush.msra.mxu0 0.0
        %700 = vmatpush.msra.mxu0 0.0
        %701 = vmatpush.msra.mxu0 %v621
        %702 = vmatpush.msra.mxu0 %v613
        %703 = vmatpush.msra.mxu0 %v605
        %704 = vmatpush.msra.mxu0 %v597
        %705 = vmatmul.f32.gmra.mxu0 %v627
        %v706 = vpop.f32.mrf.mxu0
        %v707 = vadd.f32 0.0, %v706
        %708 = vdwg.mxu0
        %709 = vmatpush.msra.mxu0 0.0
        %710 = vmatpush.msra.mxu0 0.0
        %711 = vmatpush.msra.mxu0 0.0
        %712 = vmatpush.msra.mxu0 0.0
        %713 = vmatpush.msra.mxu0 0.0
        %714 = vmatpush.msra.mxu0 0.0
        %715 = vmatpush.msra.mxu0 0.0
        %716 = vmatpush.msra.mxu0 0.0
        %717 = vmatpush.msra.mxu0 0.0
        %718 = vmatpush.msra.mxu0 0.0
        %719 = vmatpush.msra.mxu0 0.0
        %720 = vmatpush.msra.mxu0 0.0
        %721 = vmatpush.msra.mxu0 %v622
        %722 = vmatpush.msra.mxu0 %v614
        %723 = vmatpush.msra.mxu0 %v606
        %724 = vmatpush.msra.mxu0 %v598
        %725 = vmatmul.f32.gmra.mxu0 %v627
        %v726 = vpop.f32.mrf.mxu0
        %v727 = vadd.f32 0.0, %v726
        %728 = vdwg.mxu0
        %729 = vmatpush.msra.mxu0 0.0
        %730 = vmatpush.msra.mxu0 0.0
        %731 = vmatpush.msra.mxu0 0.0
        %732 = vmatpush.msra.mxu0 0.0
        %733 = vmatpush.msra.mxu0 0.0
        %734 = vmatpush.msra.mxu0 0.0
        %735 = vmatpush.msra.mxu0 0.0
        %736 = vmatpush.msra.mxu0 0.0
        %737 = vmatpush.msra.mxu0 0.0
        %738 = vmatpush.msra.mxu0 0.0
        %739 = vmatpush.msra.mxu0 0.0
        %740 = vmatpush.msra.mxu0 0.0
        %741 = vmatpush.msra.mxu0 %v623
        %742 = vmatpush.msra.mxu0 %v615
        %743 = vmatpush.msra.mxu0 %v607
        %744 = vmatpush.msra.mxu0 %v599
        %745 = vmatmul.f32.gmra.mxu0 %v627
        %v746 = vpop.f32.mrf.mxu0
        %v747 = vadd.f32 0.0, %v746
        %748 = vdwg.mxu0
        %749 = vmatpush.msra.mxu0 0.0
        %750 = vmatpush.msra.mxu0 0.0
        %751 = vmatpush.msra.mxu0 0.0
        %752 = vmatpush.msra.mxu0 0.0
        %753 = vmatpush.msra.mxu0 0.0
        %754 = vmatpush.msra.mxu0 0.0
        %755 = vmatpush.msra.mxu0 0.0
        %756 = vmatpush.msra.mxu0 0.0
        %757 = vmatpush.msra.mxu0 0.0
        %758 = vmatpush.msra.mxu0 0.0
        %759 = vmatpush.msra.mxu0 0.0
        %760 = vmatpush.msra.mxu0 0.0
        %761 = vmatpush.msra.mxu0 %v624
        %762 = vmatpush.msra.mxu0 %v616
        %763 = vmatpush.msra.mxu0 %v608
        %764 = vmatpush.msra.mxu0 %v600
        %765 = vmatmul.f32.gmra.mxu0 %v627
        %v766 = vpop.f32.mrf.mxu0
        %v767 = vadd.f32 0.0, %v766
        %768 = vdwg.mxu0
        %769 = vmatpush.msra.mxu0 0.0
        %770 = vmatpush.msra.mxu0 0.0
        %771 = vmatpush.msra.mxu0 0.0
        %772 = vmatpush.msra.mxu0 0.0
        %773 = vmatpush.msra.mxu0 0.0
        %774 = vmatpush.msra.mxu0 0.0
        %775 = vmatpush.msra.mxu0 0.0
        %776 = vmatpush.msra.mxu0 0.0
        %777 = vmatpush.msra.mxu0 0.0
        %778 = vmatpush.msra.mxu0 0.0
        %779 = vmatpush.msra.mxu0 0.0
        %780 = vmatpush.msra.mxu0 0.0
        %781 = vmatpush.msra.mxu0 %v625
        %782 = vmatpush.msra.mxu0 %v617
        %783 = vmatpush.msra.mxu0 %v609
        %784 = vmatpush.msra.mxu0 %v601
        %785 = vmatmul.f32.gmra.mxu0 %v627
        %v786 = vpop.f32.mrf.mxu0
        %v787 = vadd.f32 0.0, %v786
        %788 = vdwg.mxu0
        %s789 = smul.u32 %s23, 1024
        %v790 = vlaneseq
        %v791 = vand.u32 %v790, 127
        %v792 = vadd.s32 %v791, 128
        %v793 = vadd.s32 %v791, 256
        %v794 = vadd.s32 %v791, 384
        %v795 = vadd.s32 %v791, 512
        %v796 = vadd.s32 %v791, 640
        %v797 = vadd.s32 %v791, 768
        %v798 = vadd.s32 %v791, 896
        %v799 = vstv %s789
        %v800 = vadd.s32 %v799, %v791
        %v801 = vadd.s32 %v799, %v792
        %v802 = vadd.s32 %v799, %v793
        %v803 = vadd.s32 %v799, %v794
        %v804 = vadd.s32 %v799, %v795
        %v805 = vadd.s32 %v799, %v796
        %v806 = vadd.s32 %v799, %v797
        %v807 = vadd.s32 %v799, %v798
        %vm808 = vcmp.lt.s32.totalorder %v800, 2000
        %vm809 = vcmp.lt.s32.totalorder %v801, 2000
        %vm810 = vcmp.lt.s32.totalorder %v802, 2000
        %vm811 = vcmp.lt.s32.totalorder %v803, 2000
        %vm812 = vcmp.lt.s32.totalorder %v804, 2000
        %vm813 = vcmp.lt.s32.totalorder %v805, 2000
        %vm814 = vcmp.lt.s32.totalorder %v806, 2000
        %vm815 = vcmp.lt.s32.totalorder %v807, 2000
        %v816 = vsel %vm808, %v647, -inf
        %v817 = vsel %vm809, %v667, -inf
        %v818 = vsel %vm810, %v687, -inf
        %v819 = vsel %vm811, %v707, -inf
        %v820 = vsel %vm812, %v727, -inf
        %v821 = vsel %vm813, %v747, -inf
        %v822 = vsel %vm814, %v767, -inf
        %v823 = vsel %vm815, %v787, -inf
        %824 = vst [vmem:[%s271] sm:$0xff] %v816
        %825 = vst [vmem:[%s271 + $0x8] sm:$0xff] %v817
        %826 = vst [vmem:[%s271 + $0x10] sm:$0xff] %v818
        %827 = vst [vmem:[%s271 + $0x18] sm:$0xff] %v819
        %828 = vst [vmem:[%s271 + $0x20] sm:$0xff] %v820
        %829 = vst [vmem:[%s271 + $0x28] sm:$0xff] %v821
        %830 = vst [vmem:[%s271 + $0x30] sm:$0xff] %v822
        %831 = vst [vmem:[%s271 + $0x38] sm:$0xff] %v823
        %s832 = sand.u32 %s162, 1
        %s833 = scalar_lea.sflag [#allocation4], %s832
        %s834 = sand.u32 %s162, 1
        %s835 = smul.addr %s834, 64
        %s836 = scalar_lea.vmem [#allocation5], %s835
        // Predicated region
        $region49: #{tpu_custom_call.1} parent=43 // pred_check
          %p837 = pneg %p172
        $region50: #{tpu_custom_call.1} parent=43 // pred_check_branch
          %839 = sbr.rel (%p837) target = $region52
        $region51: #{tpu_custom_call.1} parent=43 // pred_region
          %s840 = smul.u32 8, %s23
          %842 = vsyncadd %s833, 0
          %s843 = smul.addr %s840, 8
          %s844 = scalar_lea.hbm %s6, %s843
          %s846 = sshll.u32 %s836, 4
          %s847 = int_to_ptr.vmem [resolvable:$true] %s846
          %s848 = sshll.u32 %s844, 4
          %s849 = int_to_ptr.hbm [resolvable:$true] %s848
          %851 = dma.vmem_to_hbm [thread:$0]  %s847, 1024, %s849, %s833
        $region52: #{tpu_custom_call.1} parent=43 // pred_fallthru
          _
      $region44: #{tpu_custom_call.1} parent=5 // pred_fallthru
        _
      %p852 = scmp.le.s32.totalorder 2, %s18
      // Predicated region
      $region53: #{tpu_custom_call.1} parent=5 // pred_check
        %p853 = pneg %p852
      $region54: #{tpu_custom_call.1} parent=5 // pred_check_branch
        %855 = sbr.rel (%p853) target = $region56
      $region55: #{tpu_custom_call.1} parent=5 // pred_region
        %s856 = ssub.s32 %s18, 2
        // Predicated region
        $region57: #{tpu_custom_call.1} parent=55 // pred_check
          %p857 = pneg %p178
        $region58: #{tpu_custom_call.1} parent=55 // pred_check_branch
          %859 = sbr.rel (%p857) target = $region60
        $region59: #{tpu_custom_call.1} parent=55 // pred_region
          %s860 = sand.u32 %s163, 1
          %s861 = scalar_lea.sflag [#allocation4], %s860
          %s862 = sand.u32 %s163, 1
          %s863 = smul.addr %s862, 64
          %s864 = scalar_lea.vmem [#allocation5], %s863
          %866 = dma.done %s861, 1024
        $region60: #{tpu_custom_call.1} parent=55 // pred_fallthru
          _
      $region56: #{tpu_custom_call.1} parent=5 // pred_fallthru
        _
    $region6: #{tpu_custom_call.1} parent=1 // loop_footer
      %s22 = sadd.s32 1, %s18
    $region7: #{tpu_custom_call.1} parent=1 // loop_footer_branch
      %17 = sbr.rel target = $region3
    $region8: #{tpu_custom_call.1} parent=1 // loop_exit
      _
    %867 = vsyncpa [#allocation3], 1
    %s868 = scalar_lea.sflag [#allocation3], 1
    %869 = vsyncpa %s868, 1
    %870 = vsyncpa [#allocation4], 1
    %s871 = scalar_lea.sflag [#allocation4], 1
    %872 = vsyncpa %s871, 1

</llo_original>
